<compile_context>
chip_gen: v7x
topology: tpu7x:2x2x1
jax: 0.10.0
libtpu: 0.0.40
codegen_flags: <defaults>
</compile_context>

<pallas_src>
import functools

import jax
import jax.numpy as jnp
from jax.experimental import pallas as pl
from jax.experimental.pallas import tpu as pltpu


def _round_up(x, m):
    return ((x + m - 1) // m) * m


def _cdiv(a, b):
    return (a + b - 1) // b


def _bow_mlp_kernel(x_ref, w1_ref, b1_ref, w2_ref, b2_ref, o_ref, acc_ref,
                    *, f_total, tf):
    """Grid = (batch_tiles, vocab_tiles); vocab (reduction) axis is last."""
    k = pl.program_id(1)

    @pl.when(k == 0)
    def _init():
        acc_ref[...] = jnp.zeros_like(acc_ref)

    x_blk = x_ref[...]
    if f_total % tf != 0:
        # Ragged last vocab tile (streamed fallback only): out-of-bounds x columns are
        # undefined (possibly NaN) -> zero them so they contribute nothing.
        col = jax.lax.broadcasted_iota(jnp.int32, x_blk.shape, 1)
        limit = f_total - k * tf
        x_blk = jnp.where(col < limit, x_blk, jnp.zeros_like(x_blk))

    # Partial Linear-1 contribution: [tb, tf] @ [tf, 128], f32 MXU accumulation.
    acc_ref[...] += jnp.dot(x_blk, w1_ref[...], preferred_element_type=jnp.float32)

    @pl.when(k == pl.num_programs(1) - 1)
    def _finalize():
        # Bias + ReLU in fp32 (no downcast of the activation).
        h = jnp.maximum(acc_ref[...] + b1_ref[...], 0.0)
        # Dropout(0.5) -> identity at inference time.
        # TODO(synk): training-mode dropout would need pltpu.prng_seed +
        # pltpu.prng_random_bits to build a Bernoulli mask * 1/(1-p).
        out = jnp.dot(h, w2_ref[...], preferred_element_type=jnp.float32) + b2_ref[...]
        o_ref[...] = out.astype(o_ref.dtype)


def bow_classifier_forward(x, w1, b1, w2, b2, *, tb=256, tf=2048,
                           compute_dtype=jnp.bfloat16):
    """logits = relu(x @ w1 + b1) @ w2 + b2   (eval-mode Dropout == identity).

    x: [B, F]   w1: [F, 128]   b1: [1, 128]   w2: [128, N]   b2: [1, N]
    Returns logits [B, N] in x.dtype.
    """
    B, F = x.shape
    F_w, H = w1.shape
    N = w2.shape[1]
    assert F_w == F and w2.shape[0] == H and b1.shape == (1, H) and b2.shape == (1, N)
    out_dtype = x.dtype

    # ------------- one-time weight prep (ideally done at model-load time) -------------
    N_pad = _round_up(N, 128)                 # lane-dense, unmasked output stores
    if N_pad != N:
        w2 = jnp.pad(w2, ((0, 0), (0, N_pad - N)))
        b2 = jnp.pad(b2, ((0, 0), (0, N_pad - N)))
    b1 = b1.astype(jnp.float32)
    w2 = w2.astype(jnp.float32)
    b2 = b2.astype(jnp.float32)

    # Dominant HBM streams (x, W1) in bf16: halves bandwidth, f32 MXU accumulation.
    # TODO(synk): in a real pipeline produce x in bf16 upstream so this cast fuses.
    x_c = x.astype(compute_dtype)
    w1_c = w1.astype(compute_dtype)
    in_bytes = jnp.dtype(compute_dtype).itemsize

    # ------------- batch tiling ---------------------------------------------------------
    B_pad8 = _round_up(B, 8)
    tb = max(8, min(tb, B_pad8))
    # Keep >=2 batch tiles when the batch allows: free on 1-TC chips (weights are
    # VMEM-resident) and lets both of v7x's TensorCores stream independent x tiles.
    if B_pad8 // tb < 2 and B_pad8 >= 16:
        tb = max(8, _round_up(_cdiv(B, 2), 8))
    nb = _cdiv(B, tb)          # ragged batch tail: Pallas clips the partial output store

    # ------------- vocab (reduction) tiling: resident W1 when VMEM allows ---------------
    try:
        vmem_cap = int(pltpu.get_tpu_info().vmem_capacity_bytes)
    except Exception:          # fall back to v7x's 64 MiB per-core VMEM (worst case)
        vmem_cap = 64 * 1024 * 1024
    resid_budget = int(vmem_cap * 0.7)

    def footprint(tf_):
        return (2 * tb * tf_ * in_bytes            # x tile, double-buffered
                + 2 * tf_ * H * in_bytes           # W1 tile (conservatively 2x)
                + 2 * tb * N_pad * 4                # output tile, double-buffered
                + tb * H * 4                        # f32 accumulator scratch
                + 2 * (H + H * N_pad + N_pad) * 4)  # b1 / W2 / b2 (resident, tiny)

    if footprint(F) <= resid_budget:
        tf_eff, nk = F, 1                           # whole W1 VMEM-resident, no re-stream
    else:
        tf_eff = max(512, min(_round_up(tf, 128), _round_up(F, 128)))
        while footprint(tf_eff) > resid_budget and tf_eff > 512:
            tf_eff = max(512, tf_eff // 2)
        nk = _cdiv(F, tf_eff)
        if nk * tf_eff != F:                        # one-time zero-pad of W1 rows
            w1_c = jnp.pad(w1_c, ((0, nk * tf_eff - F), (0, 0)))

    vmem_limit = int(min(vmem_cap * 0.9,
                         max(32 * 1024 * 1024, 2 * footprint(tf_eff))))

    # ------------- cost estimate (advisory) ---------------------------------------------
    flops = 2 * B * F * H + 2 * B * H * N_pad
    w1_reads = 1 if nk == 1 else nb                 # streamed W1 is re-read per batch tile
    bytes_accessed = int(x_c.size * in_bytes
                         + w1_reads * w1_c.size * in_bytes
                         + (b1.size + w2.size + b2.size) * 4
                         + B * N_pad * jnp.dtype(out_dtype).itemsize)

    kernel = functools.partial(_bow_mlp_kernel, f_total=F, tf=tf_eff)

    out_padded = pl.pallas_call(
        kernel,
        out_shape=jax.ShapeDtypeStruct((B, N_pad), out_dtype),
        grid=(nb, nk),
        in_specs=[
            pl.BlockSpec((tb, tf_eff), lambda i, k: (i, k)),   # x: batch x vocab tile
            pl.BlockSpec((tf_eff, H), lambda i, k: (k, 0)),    # W1 (resident when nk==1)
            pl.BlockSpec((1, H), lambda i, k: (0, 0)),         # b1: VMEM-resident
            pl.BlockSpec((H, N_pad), lambda i, k: (0, 0)),     # W2: VMEM-resident
            pl.BlockSpec((1, N_pad), lambda i, k: (0, 0)),     # b2: VMEM-resident
        ],
        # Output block index constant across k -> resident accumulator pattern; it is
        # only written under pl.when(k == last).
        out_specs=pl.BlockSpec((tb, N_pad), lambda i, k: (i, 0)),
        scratch_shapes=[pltpu.VMEM((tb, H), jnp.float32)],
        compiler_params=pltpu.CompilerParams(
            dimension_semantics=("parallel", "arbitrary"),
            vmem_limit_bytes=vmem_limit),
        cost_estimate=pl.CostEstimate(
            flops=flops, transcendentals=0, bytes_accessed=bytes_accessed),
    )(x_c, w1_c, b1, w2, b2)

    return out_padded[:, :N]


def init_params(key, in_features, hidden, out_units, dtype=jnp.float32):
    """Deterministic init mimicking nn.Linear default (uniform +/- 1/sqrt(fan_in))."""
    k1, k2, k3, k4 = jax.random.split(key, 4)
    bound1 = 1.0 / (in_features ** 0.5)
    bound2 = 1.0 / (hidden ** 0.5)
    w1 = jax.random.uniform(k1, (in_features, hidden), dtype, -bound1, bound1)
    b1 = jax.random.uniform(k2, (1, hidden), dtype, -bound1, bound1)
    w2 = jax.random.uniform(k3, (hidden, out_units), dtype, -bound2, bound2)
    b2 = jax.random.uniform(k4, (1, out_units), dtype, -bound2, bound2)
    return w1, b1, w2, b2


if __name__ == "__main__":
    key = jax.random.PRNGKey(0)
    kx, kp = jax.random.split(key)

    # Small but tiling-exercising config: 2 parallel batch tiles, resident-W1 path.
    B, in_features, hidden, out_units = 256, 512, 128, 4

    x = jax.random.normal(kx, (B, in_features), jnp.float32)
    w1, b1, w2, b2 = init_params(kp, in_features, hidden, out_units)

    out = bow_classifier_forward(x, w1, b1, w2, b2)
    out = jax.block_until_ready(out)

    # Pure-JAX reference with the same bf16-rounded dominant streams
    # (eval-mode dropout == identity).
    xb = x.astype(jnp.bfloat16)
    w1b = w1.astype(jnp.bfloat16)
    h = jnp.maximum(jnp.dot(xb, w1b, preferred_element_type=jnp.float32) + b1, 0.0)
    ref = jnp.dot(h, w2, preferred_element_type=jnp.float32) + b2

    assert out.shape == (B, out_units)
    assert out.dtype == jnp.float32
    err = float(jnp.max(jnp.abs(out - ref)))
    assert jnp.allclose(out, ref, atol=1e-2, rtol=1e-2), err

    print("KERNEL_OK")
</pallas_src>

<mosaic_0001>
module attributes {stable_mosaic.version = 11 : i64} {
  func.func @_bow_mlp_kernel(%arg0: i32, %arg1: i32, %arg2: memref<128x512xbf16, #tpu.memory_space<vmem>>, %arg3: memref<512x128xbf16, #tpu.memory_space<vmem>>, %arg4: memref<1x128xf32, #tpu.memory_space<vmem>>, %arg5: memref<128x128xf32, #tpu.memory_space<vmem>>, %arg6: memref<1x128xf32, #tpu.memory_space<vmem>>, %arg7: memref<128x128xf32, #tpu.memory_space<vmem>>, %arg8: memref<128x128xf32, #tpu.memory_space<vmem>>) attributes {dimension_semantics = [#tpu.dimension_semantics<parallel>, #tpu.dimension_semantics<arbitrary>], iteration_bounds = array<i64: 2, 1>, scalar_prefetch = 0 : i64, scratch_operands = 1 : i64, tpu.core_type = #tpu.core_type<tc>, window_params = [{transform_indices = @transform_0, window_bounds = array<i64: 128, 512>}, {transform_indices = @transform_1, window_bounds = array<i64: 512, 128>}, {pipeline_mode = #tpu.pipeline_mode<synchronous>, transform_indices = @transform_2, window_bounds = array<i64: 1, 128>}, {pipeline_mode = #tpu.pipeline_mode<synchronous>, transform_indices = @transform_3, window_bounds = array<i64: 128, 128>}, {pipeline_mode = #tpu.pipeline_mode<synchronous>, transform_indices = @transform_4, window_bounds = array<i64: 1, 128>}, {transform_indices = @transform_5, window_bounds = array<i64: 128, 128>}]} {
    %c0_i32 = arith.constant 0 : i32
    %0 = arith.cmpi eq, %arg1, %c0_i32 : i32
    %1 = arith.extui %0 : i1 to i32
    %c0_i32_0 = arith.constant 0 : i32
    %2 = arith.cmpi ne, %1, %c0_i32_0 : i32
    scf.if %2 {
      %cst_10 = arith.constant 0.000000e+00 : f32
      %12 = vector.broadcast %cst_10 : f32 to vector<128x128xf32>
      %c0_11 = arith.constant 0 : index
      %c0_12 = arith.constant 0 : index
      %13 = vector.load %arg8[%c0_11, %c0_12] : memref<128x128xf32, #tpu.memory_space<vmem>>, vector<128x128xf32>
      tpu.vector_store %arg8[%c0_11, %c0_12], %12 {strides = array<i32>} : memref<128x128xf32, #tpu.memory_space<vmem>>, vector<128x128xf32>,
    } else {
    }
    %c0 = arith.constant 0 : index
    %c0_1 = arith.constant 0 : index
    %3 = vector.load %arg2[%c0, %c0_1] : memref<128x512xbf16, #tpu.memory_space<vmem>>, vector<128x512xbf16>
    %c0_2 = arith.constant 0 : index
    %c0_3 = arith.constant 0 : index
    %4 = vector.load %arg8[%c0_2, %c0_3] : memref<128x128xf32, #tpu.memory_space<vmem>>, vector<128x128xf32>
    %c0_4 = arith.constant 0 : index
    %c0_5 = arith.constant 0 : index
    %5 = vector.load %arg3[%c0_4, %c0_5] : memref<512x128xbf16, #tpu.memory_space<vmem>>, vector<512x128xbf16>
    %cst = arith.constant dense<0.000000e+00> : vector<128x128xf32>
    %6 = tpu.matmul %3, %5, %cst {dimension_numbers = #tpu.dot_dimension_numbers<[1], [0], [0], [1], [0, 0, 1, 1], [], []>} : vector<128x512xbf16>, vector<512x128xbf16>, vector<128x128xf32> -> vector<128x128xf32>
    %7 = arith.addf %4, %6 : vector<128x128xf32>
    %c0_6 = arith.constant 0 : index
    %c0_7 = arith.constant 0 : index
    %8 = vector.load %arg8[%c0_6, %c0_7] : memref<128x128xf32, #tpu.memory_space<vmem>>, vector<128x128xf32>
    tpu.vector_store %arg8[%c0_6, %c0_7], %7 {strides = array<i32>} : memref<128x128xf32, #tpu.memory_space<vmem>>, vector<128x128xf32>,
    %c0_i32_8 = arith.constant 0 : i32
    %9 = arith.cmpi eq, %arg1, %c0_i32_8 : i32
    %10 = arith.extui %9 : i1 to i32
    %c0_i32_9 = arith.constant 0 : i32
    %11 = arith.cmpi ne, %10, %c0_i32_9 : i32
    scf.if %11 {
      %c0_10 = arith.constant 0 : index
      %c0_11 = arith.constant 0 : index
      %12 = vector.load %arg8[%c0_10, %c0_11] : memref<128x128xf32, #tpu.memory_space<vmem>>, vector<128x128xf32>
      %c0_12 = arith.constant 0 : index
      %c0_13 = arith.constant 0 : index
      %13 = vector.load %arg4[%c0_12, %c0_13] : memref<1x128xf32, #tpu.memory_space<vmem>>, vector<1x128xf32>
      %14 = vector.broadcast %13 : vector<1x128xf32> to vector<128x128xf32>
      %15 = arith.addf %12, %14 : vector<128x128xf32>
      %cst_14 = arith.constant 0.000000e+00 : f32
      %16 = vector.broadcast %cst_14 : f32 to vector<128x128xf32>
      %17 = arith.maximumf %15, %16 : vector<128x128xf32>
      %c0_15 = arith.constant 0 : index
      %c0_16 = arith.constant 0 : index
      %18 = vector.load %arg5[%c0_15, %c0_16] : memref<128x128xf32, #tpu.memory_space<vmem>>, vector<128x128xf32>
      %cst_17 = arith.constant dense<0.000000e+00> : vector<128x128xf32>
      %19 = tpu.matmul %17, %18, %cst_17 {dimension_numbers = #tpu.dot_dimension_numbers<[1], [0], [0], [1], [0, 0, 1, 1], [], []>} : vector<128x128xf32>, vector<128x128xf32>, vector<128x128xf32> -> vector<128x128xf32>
      %c0_18 = arith.constant 0 : index
      %c0_19 = arith.constant 0 : index
      %20 = vector.load %arg6[%c0_18, %c0_19] : memref<1x128xf32, #tpu.memory_space<vmem>>, vector<1x128xf32>
      %21 = vector.broadcast %20 : vector<1x128xf32> to vector<128x128xf32>
      %22 = arith.addf %19, %21 : vector<128x128xf32>
      %c0_20 = arith.constant 0 : index
      %c0_21 = arith.constant 0 : index
      %23 = vector.load %arg7[%c0_20, %c0_21] : memref<128x128xf32, #tpu.memory_space<vmem>>, vector<128x128xf32>
      tpu.vector_store %arg7[%c0_20, %c0_21], %22 {strides = array<i32>} : memref<128x128xf32, #tpu.memory_space<vmem>>, vector<128x128xf32>,
    } else {
    }
    return
  }
  func.func @transform_0(%arg0: i32, %arg1: i32) -> (i32, i32) {
    %c0_i32 = arith.constant 0 : i32
    return %arg0, %arg1 : i32, i32
  }
  func.func @transform_1(%arg0: i32, %arg1: i32) -> (i32, i32) {
    %c0_i32 = arith.constant 0 : i32
    %c0_i32_0 = arith.constant 0 : i32
    return %arg1, %c0_i32 : i32, i32
  }
  func.func @transform_2(%arg0: i32, %arg1: i32) -> (i32, i32) {
    %c0_i32 = arith.constant 0 : i32
    %c0_i32_0 = arith.constant 0 : i32
    %c0_i32_1 = arith.constant 0 : i32
    return %c0_i32, %c0_i32_0 : i32, i32
  }
  func.func @transform_3(%arg0: i32, %arg1: i32) -> (i32, i32) {
    %c0_i32 = arith.constant 0 : i32
    %c0_i32_0 = arith.constant 0 : i32
    %c0_i32_1 = arith.constant 0 : i32
    return %c0_i32, %c0_i32_0 : i32, i32
  }
  func.func @transform_4(%arg0: i32, %arg1: i32) -> (i32, i32) {
    %c0_i32 = arith.constant 0 : i32
    %c0_i32_0 = arith.constant 0 : i32
    %c0_i32_1 = arith.constant 0 : i32
    return %c0_i32, %c0_i32_0 : i32, i32
  }
  func.func @transform_5(%arg0: i32, %arg1: i32) -> (i32, i32) {
    %c0_i32 = arith.constant 0 : i32
    %c0_i32_0 = arith.constant 0 : i32
    return %arg0, %c0_i32 : i32, i32
  }
}

</mosaic_0001>

<llo_original>
// kernel: tpu_custom_call.1
$region0: #{tpu_custom_call.1}
  #allocation0 [shape = 'u32[]', space=smem, size = 0x4, offset = 0x4, fixed_abs, tag = 'smem constant byte address 0x4 - core index']
  #allocation1 [shape = 'u32[144,128]{1,0:T(1,128)}', space=vmem, size = 0x12000, scoped, tag = 'internal scratch']
  #allocation2 [shape = 'f32[128,128]{1,0:T(8,128)}', space=vmem, size = 0x10000, scoped, tag = 'scratch operand']
  %s0 = inlined_call_operand.hbm [shape: bf16[256,512], index: 0, kind: input, shape index: {}]
  %s1 = inlined_call_operand.hbm [shape: bf16[512,128], index: 1, kind: input, shape index: {}]
  %s2 = inlined_call_operand.vmem [shape: f32[1,128], index: 2, kind: input, shape index: {}]
  %s3 = inlined_call_operand.hbm [shape: f32[128,128], index: 3, kind: input, shape index: {}]
  %s4 = inlined_call_operand.vmem [shape: f32[1,128], index: 4, kind: input, shape index: {}]
  %s5 = inlined_call_operand.hbm [shape: f32[256,128], index: 5, kind: output, shape index: {}]
  %s6 = sld [smem:[#allocation0]]
  $region73: #{tpu_custom_call.1} parent=0
    _
  %s8 = ssub.s32 1, %s6
  %s9 = scalar_select 0, %s8, %s6
  $region1: #{tpu_custom_call.1} parent=0
    #allocation3 [shape = 'u8[262144]{0}', space=vmem, size = 0x40000, scoped, tag = 'input window, operand 0']
    #allocation4 [shape = 's32[2]{0}', space=sflag, size = 0x8, scoped, tag = 'scoped memory for tpu_custom_call.1']
    #allocation5 [shape = 's32[2]{0}', space=sflag, size = 0x8, scoped, tag = 'scoped memory for tpu_custom_call.1']
    #allocation6 [shape = 'u8[131072]{0}', space=vmem, size = 0x20000, scoped, tag = 'input window, operand 1, single buffered']
    #allocation7 [shape = 's32[1]{0}', space=sflag, size = 0x4, scoped, tag = 'scoped memory for tpu_custom_call.1']
    #allocation8 [shape = 'u8[65536]{0}', space=vmem, size = 0x10000, scoped, tag = 'input window, operand 3, single buffered']
    #allocation9 [shape = 'u8[131072]{0}', space=vmem, size = 0x20000, scoped, tag = 'output window, operand 0']
    %10 = vsyncpa [#allocation4], 0
    %s11 = scalar_lea.sflag [#allocation4], 1
    %12 = vsyncpa %s11, 0
    %13 = vsyncpa [#allocation7], 0
    %14 = vsyncpa [#allocation5], 0
    %s15 = scalar_lea.sflag [#allocation5], 1
    %16 = vsyncpa %s15, 0
    loop: start=0, step=1, limit=4
    $region2: #{tpu_custom_call.1} parent=1 // loop_pre_header
      _
    $region3: #{tpu_custom_call.1} parent=1 // loop_header
      %s18 = sphi 0, %s22
      %p19 = scmp.ge.s32.totalorder %s18, 4
      %s25 = sphi 0, %s37
      %s26 = sphi 0, %s33
      %s27 = sphi 0, %s25
      %s28 = sphi 0, %s26
      %s29 = sphi 0, %s27
      %s30 = sphi 0, %s28
      %s42 = sphi 0, %s44
      %s45 = sphi 0, %s42
      %s46 = sphi 0, %s45
      %s62 = sphi 0, %s46
      %s68 = sphi 0, %s70
      %s71 = sphi 0, %s68
      %s72 = sphi 0, %s71
      %s88 = sphi 0, %s72
      %s92 = sphi 0, %s92
      %s94 = sphi 0, %s92
      %s95 = sphi 0, %s94
      %s109 = sphi 0, %s95
      %s113 = sphi 0, %s113
      %s115 = sphi 0, %s113
      %s116 = sphi 0, %s115
      %s130 = sphi 0, %s116
      %s134 = sphi 0, %s134
      %s136 = sphi 0, %s134
      %s137 = sphi 0, %s136
      %s151 = sphi 0, %s137
      %s157 = sphi 0, %s159
      %s160 = sphi 0, %s157
      %s161 = sphi 0, %s160
      %s177 = sphi 0, %s161
    $region4: #{tpu_custom_call.1} parent=1 // loop_header_branch
      %21 = sbr.rel (%p19) target = $region8
    $region5: #{tpu_custom_call.1} parent=1 // loop_body
      %s23 = ssub.s32 %s18, 1
      %s24 = ssub.s32 %s18, 2
      %s31 = sadd.s32 1, %s26
      %p32 = scmp.ge.s32.totalorder %s31, 1
      %s33 = scalar_select %p32, 0, %s31
      %s34 = sadd.s32 1, %s25
      %s35 = scalar_select %p32, %s34, %s25
      %p36 = scmp.ge.s32.totalorder %s35, 2
      %s37 = scalar_select %p36, 0, %s35
      %s38 = ssub.s32 %s25, %s37
      %s39 = ssub.s32 %s26, %s33
      %s40 = sor.u32 %s38, %s39
      %p41 = scmp.eq.s32.totalorder %s40, 0
      %s43 = sadd.s32 %s42, 1
      %s44 = scalar_select %p41, %s42, %s43
      %p47 = pneg %p41
      %p48 = scmp.eq.s32.totalorder %s18, 1
      %p49 = por %p47, %p48
      %p50 = scmp.ne.s32.totalorder %s42, %s45
      %p51 = scmp.eq.s32.totalorder %s18, 0
      %p52 = por %p50, %p51
      %p53 = scmp.ne.s32.totalorder %s42, %s45
      %p54 = scmp.eq.s32.totalorder %s23, 1
      %p55 = por %p53, %p54
      %p56 = scmp.ne.s32.totalorder %s45, %s46
      %p57 = scmp.eq.s32.totalorder %s23, 0
      %p58 = por %p56, %p57
      %p59 = scmp.ne.s32.totalorder %s45, %s46
      %p60 = scmp.eq.s32.totalorder %s24, 1
      %p61 = por %p59, %p60
      %p63 = scmp.ne.s32.totalorder %s46, %s62
      %p64 = scmp.eq.s32.totalorder %s24, 0
      %p65 = por %p63, %p64
      %s66 = ssub.s32 %s26, %s33
      %p67 = scmp.eq.s32.totalorder %s66, 0
      %s69 = sadd.s32 %s68, 1
      %s70 = scalar_select %p67, %s68, %s69
      %p73 = pneg %p67
      %p74 = scmp.eq.s32.totalorder %s18, 1
      %p75 = por %p73, %p74
      %p76 = scmp.ne.s32.totalorder %s68, %s71
      %p77 = scmp.eq.s32.totalorder %s18, 0
      %p78 = por %p76, %p77
      %p79 = scmp.ne.s32.totalorder %s68, %s71
      %p80 = scmp.eq.s32.totalorder %s23, 1
      %p81 = por %p79, %p80
      %p82 = scmp.ne.s32.totalorder %s71, %s72
      %p83 = scmp.eq.s32.totalorder %s23, 0
      %p84 = por %p82, %p83
      %p85 = scmp.ne.s32.totalorder %s71, %s72
      %p86 = scmp.eq.s32.totalorder %s24, 1
      %p87 = por %p85, %p86
      %p89 = scmp.ne.s32.totalorder %s72, %s88
      %p90 = scmp.eq.s32.totalorder %s24, 0
      %p91 = por %p89, %p90
      %s93 = sadd.s32 %s92, 1
      %p96 = scmp.eq.s32.totalorder %s18, 1
      %p97 = scmp.ne.s32.totalorder %s92, %s94
      %p98 = scmp.eq.s32.totalorder %s18, 0
      %p99 = por %p97, %p98
      %p100 = scmp.ne.s32.totalorder %s92, %s94
      %p101 = scmp.eq.s32.totalorder %s23, 1
      %p102 = por %p100, %p101
      %p103 = scmp.ne.s32.totalorder %s94, %s95
      %p104 = scmp.eq.s32.totalorder %s23, 0
      %p105 = por %p103, %p104
      %p106 = scmp.ne.s32.totalorder %s94, %s95
      %p107 = scmp.eq.s32.totalorder %s24, 1
      %p108 = por %p106, %p107
      %p110 = scmp.ne.s32.totalorder %s95, %s109
      %p111 = scmp.eq.s32.totalorder %s24, 0
      %p112 = por %p110, %p111
      %s114 = sadd.s32 %s113, 1
      %p117 = scmp.eq.s32.totalorder %s18, 1
      %p118 = scmp.ne.s32.totalorder %s113, %s115
      %p119 = scmp.eq.s32.totalorder %s18, 0
      %p120 = por %p118, %p119
      %p121 = scmp.ne.s32.totalorder %s113, %s115
      %p122 = scmp.eq.s32.totalorder %s23, 1
      %p123 = por %p121, %p122
      %p124 = scmp.ne.s32.totalorder %s115, %s116
      %p125 = scmp.eq.s32.totalorder %s23, 0
      %p126 = por %p124, %p125
      %p127 = scmp.ne.s32.totalorder %s115, %s116
      %p128 = scmp.eq.s32.totalorder %s24, 1
      %p129 = por %p127, %p128
      %p131 = scmp.ne.s32.totalorder %s116, %s130
      %p132 = scmp.eq.s32.totalorder %s24, 0
      %p133 = por %p131, %p132
      %s135 = sadd.s32 %s134, 1
      %p138 = scmp.eq.s32.totalorder %s18, 1
      %p139 = scmp.ne.s32.totalorder %s134, %s136
      %p140 = scmp.eq.s32.totalorder %s18, 0
      %p141 = por %p139, %p140
      %p142 = scmp.ne.s32.totalorder %s134, %s136
      %p143 = scmp.eq.s32.totalorder %s23, 1
      %p144 = por %p142, %p143
      %p145 = scmp.ne.s32.totalorder %s136, %s137
      %p146 = scmp.eq.s32.totalorder %s23, 0
      %p147 = por %p145, %p146
      %p148 = scmp.ne.s32.totalorder %s136, %s137
      %p149 = scmp.eq.s32.totalorder %s24, 1
      %p150 = por %p148, %p149
      %p152 = scmp.ne.s32.totalorder %s137, %s151
      %p153 = scmp.eq.s32.totalorder %s24, 0
      %p154 = por %p152, %p153
      %s155 = ssub.s32 %s25, %s37
      %p156 = scmp.eq.s32.totalorder %s155, 0
      %s158 = sadd.s32 %s157, 1
      %s159 = scalar_select %p156, %s157, %s158
      %p162 = pneg %p156
      %p163 = scmp.eq.s32.totalorder %s18, 1
      %p164 = por %p162, %p163
      %p165 = scmp.ne.s32.totalorder %s157, %s160
      %p166 = scmp.eq.s32.totalorder %s18, 0
      %p167 = por %p165, %p166
      %p168 = scmp.ne.s32.totalorder %s157, %s160
      %p169 = scmp.eq.s32.totalorder %s23, 1
      %p170 = por %p168, %p169
      %p171 = scmp.ne.s32.totalorder %s160, %s161
      %p172 = scmp.eq.s32.totalorder %s23, 0
      %p173 = por %p171, %p172
      %p174 = scmp.ne.s32.totalorder %s160, %s161
      %p175 = scmp.eq.s32.totalorder %s24, 1
      %p176 = por %p174, %p175
      %p178 = scmp.ne.s32.totalorder %s161, %s177
      %p179 = scmp.eq.s32.totalorder %s24, 0
      %p180 = por %p178, %p179
      %p181 = scmp.le.s32.totalorder 1, %s18
      %p182 = scmp.lt.s32.totalorder %s18, 3
      %p183 = pnand %p181, %p182
      %p184 = pneg %p183
      // Predicated region
      $region9: #{tpu_custom_call.1} parent=5 // pred_check
        _
      $region10: #{tpu_custom_call.1} parent=5 // pred_check_branch
        %186 = sbr.rel (%p183) target = $region12
      $region11: #{tpu_custom_call.1} parent=5 // pred_region
        %s187 = ssub.s32 %s18, 1
        // Predicated region
        $region13: #{tpu_custom_call.1} parent=11 // pred_check
          %p188 = pneg %p84
        $region14: #{tpu_custom_call.1} parent=11 // pred_check_branch
          %190 = sbr.rel (%p188) target = $region16
        $region15: #{tpu_custom_call.1} parent=11 // pred_region
          %s191 = smul.u32 64, %s28
          %s193 = ssub.s32 4096, 4096
          %194 = vsyncadd [#allocation7], %s193
          %s195 = smul.addr %s191, 64
          %s196 = scalar_lea.hbm %s1, %s195
          %s197 = sshll.u32 [#allocation6], 4
          %s198 = int_to_ptr.vmem [resolvable:$true] %s197
          %203 = dma.hbm_to_vmem [thread:$0]  %s196, 4096, %s198, [#allocation7], 64, 64, 4
        $region16: #{tpu_custom_call.1} parent=11 // pred_fallthru
          _
        // Predicated region
        $region17: #{tpu_custom_call.1} parent=11 // pred_check
          %p204 = pneg %p105
        $region18: #{tpu_custom_call.1} parent=11 // pred_check_branch
          %206 = sbr.rel (%p204) target = $region20
        $region19: #{tpu_custom_call.1} parent=11 // pred_region
          _
        $region20: #{tpu_custom_call.1} parent=11 // pred_fallthru
          _
        // Predicated region
        $region21: #{tpu_custom_call.1} parent=11 // pred_check
          %p207 = pneg %p126
        $region22: #{tpu_custom_call.1} parent=11 // pred_check_branch
          %209 = sbr.rel (%p207) target = $region24
        $region23: #{tpu_custom_call.1} parent=11 // pred_region
          %s211 = ssub.s32 2048, 2048
          %212 = vsyncadd [#allocation7], %s211
          %s213 = sshll.u32 [#allocation8], 4
          %s214 = int_to_ptr.vmem [resolvable:$true] %s213
          %219 = dma.hbm_to_vmem [thread:$0]  %s3, 2048, %s214, [#allocation7], 128, 128, 8
        $region24: #{tpu_custom_call.1} parent=11 // pred_fallthru
          _
        // Predicated region
        $region25: #{tpu_custom_call.1} parent=11 // pred_check
          %p220 = pneg %p147
        $region26: #{tpu_custom_call.1} parent=11 // pred_check_branch
          %222 = sbr.rel (%p220) target = $region28
        $region27: #{tpu_custom_call.1} parent=11 // pred_region
          _
        $region28: #{tpu_custom_call.1} parent=11 // pred_fallthru
          _
      $region12: #{tpu_custom_call.1} parent=5 // pred_fallthru
        _
      %p223 = scmp.lt.s32.totalorder %s18, 2
      // Predicated region
      $region29: #{tpu_custom_call.1} parent=5 // pred_check
        %p224 = pneg %p223
      $region30: #{tpu_custom_call.1} parent=5 // pred_check_branch
        %226 = sbr.rel (%p224) target = $region32
      $region31: #{tpu_custom_call.1} parent=5 // pred_region
        // Predicated region
        $region33: #{tpu_custom_call.1} parent=31 // pred_check
          %p227 = pneg %p52
        $region34: #{tpu_custom_call.1} parent=31 // pred_check_branch
          %229 = sbr.rel (%p227) target = $region36
        $region35: #{tpu_custom_call.1} parent=31 // pred_region
          %s230 = sand.u32 %s42, 1
          %s231 = scalar_lea.sflag [#allocation4], %s230
          %s232 = sand.u32 %s42, 1
          %s233 = smul.addr %s232, 256
          %s234 = scalar_lea.vmem [#allocation3], %s233
          %s235 = smul.u32 16, %s25
          %s236 = smul.u32 4, %s26
          %s238 = ssub.s32 4096, 4096
          %239 = vsyncadd %s231, %s238
          %s240 = smul.addr %s235, 4
          %s241 = sadd.s32 %s236, %s240
          %s242 = smul.addr %s241, 64
          %s243 = scalar_lea.hbm %s0, %s242
          %s244 = sshll.u32 %s234, 4
          %s245 = int_to_ptr.vmem [resolvable:$true] %s244
          %250 = dma.hbm_to_vmem [thread:$0]  %s243, 4096, %s245, %s231, 256, 256, 16
        $region36: #{tpu_custom_call.1} parent=31 // pred_fallthru
          _
      $region32: #{tpu_custom_call.1} parent=5 // pred_fallthru
        _
      %p251 = scmp.le.s32.totalorder 1, %s18
      %p252 = scmp.lt.s32.totalorder %s18, 3
      %p253 = pnand %p251, %p252
      %p254 = pneg %p253
      // Predicated region
      $region37: #{tpu_custom_call.1} parent=5 // pred_check
        _
      $region38: #{tpu_custom_call.1} parent=5 // pred_check_branch
        %256 = sbr.rel (%p253) target = $region40
      $region39: #{tpu_custom_call.1} parent=5 // pred_region
        %s257 = ssub.s32 %s18, 1
        %s258 = sand.u32 %s45, 1
        %s259 = scalar_lea.sflag [#allocation4], %s258
        %s260 = sand.u32 %s45, 1
        %s261 = smul.addr %s260, 256
        %s262 = scalar_lea.vmem [#allocation3], %s261
        // Predicated region
        $region41: #{tpu_custom_call.1} parent=39 // pred_check
          %p263 = pneg %p58
        $region42: #{tpu_custom_call.1} parent=39 // pred_check_branch
          %265 = sbr.rel (%p263) target = $region44
        $region43: #{tpu_custom_call.1} parent=39 // pred_region
          %266 = dma.done %s259, 4096
        $region44: #{tpu_custom_call.1} parent=39 // pred_fallthru
          _
        // Predicated region
        $region45: #{tpu_custom_call.1} parent=39 // pred_check
          %p267 = pneg %p84
        $region46: #{tpu_custom_call.1} parent=39 // pred_check_branch
          %269 = sbr.rel (%p267) target = $region48
        $region47: #{tpu_custom_call.1} parent=39 // pred_region
          %270 = dma.done [#allocation7], 4096
        $region48: #{tpu_custom_call.1} parent=39 // pred_fallthru
          _
        // Predicated region
        $region49: #{tpu_custom_call.1} parent=39 // pred_check
          %p271 = pneg %p126
        $region50: #{tpu_custom_call.1} parent=39 // pred_check_branch
          %273 = sbr.rel (%p271) target = $region52
        $region51: #{tpu_custom_call.1} parent=39 // pred_region
          %274 = dma.done [#allocation7], 2048
        $region52: #{tpu_custom_call.1} parent=39 // pred_fallthru
          _
        %s275 = sand.u32 %s45, 1
        %s276 = scalar_lea.sflag [#allocation4], %s275
        %s277 = sand.u32 %s45, 1
        %s278 = smul.addr %s277, 256
        %s279 = scalar_lea.vmem [#allocation3], %s278
        %p280 = pneg %p58
        %p281 = pneg %p55
        %p282 = pneg %p84
        %p283 = pneg %p81
        %p284 = pneg %p105
        %p285 = pneg %p102
        %p286 = pneg %p126
        %p287 = pneg %p123
        %p288 = pneg %p147
        %p289 = pneg %p144
        %p290 = pneg %p173
        %p291 = pneg %p170
        %s292 = sand.u32 %s160, 1
        %s293 = scalar_lea.sflag [#allocation5], %s292
        %s294 = sand.u32 %s160, 1
        %s295 = smul.addr %s294, 128
        %s296 = scalar_lea.vmem [#allocation9], %s295
        %s297 = smul.u32 16, %s27
        %s298 = smul.u32 4, %s28
        %s299 = smul.u32 64, %s28
        %s300 = smul.u32 16, %s27
        %p302 = scmp.eq.s32.totalorder %s28, 0
        // Predicated region
        $region53: #{tpu_custom_call.1} parent=39 // pred_check
          %p303 = pneg %p302
        $region54: #{tpu_custom_call.1} parent=39 // pred_check_branch
          %305 = sbr.rel (%p303) target = $region56
        $region55: #{tpu_custom_call.1} parent=39 // pred_region
          %306 = vst [vmem:[#allocation2] sm:$0xff] 0.0
          %307 = vst [vmem:[#allocation2 + $0x8] sm:$0xff] 0.0
          %308 = vst [vmem:[#allocation2 + $0x10] sm:$0xff] 0.0
          %309 = vst [vmem:[#allocation2 + $0x18] sm:$0xff] 0.0
          %310 = vst [vmem:[#allocation2 + $0x20] sm:$0xff] 0.0
          %311 = vst [vmem:[#allocation2 + $0x28] sm:$0xff] 0.0
          %312 = vst [vmem:[#allocation2 + $0x30] sm:$0xff] 0.0
          %313 = vst [vmem:[#allocation2 + $0x38] sm:$0xff] 0.0
          %314 = vst [vmem:[#allocation2 + $0x40] sm:$0xff] 0.0
          %315 = vst [vmem:[#allocation2 + $0x48] sm:$0xff] 0.0
          %316 = vst [vmem:[#allocation2 + $0x50] sm:$0xff] 0.0
          %317 = vst [vmem:[#allocation2 + $0x58] sm:$0xff] 0.0
          %318 = vst [vmem:[#allocation2 + $0x60] sm:$0xff] 0.0
          %319 = vst [vmem:[#allocation2 + $0x68] sm:$0xff] 0.0
          %320 = vst [vmem:[#allocation2 + $0x70] sm:$0xff] 0.0
          %321 = vst [vmem:[#allocation2 + $0x78] sm:$0xff] 0.0
        $region56: #{tpu_custom_call.1} parent=39 // pred_fallthru
          _
        %v322 = vld [vmem:[%s262] sm:$0xff]
        %v323 = vld [vmem:[%s262 + $0x8] sm:$0xff]
        %v324 = vld [vmem:[%s262 + $0x10] sm:$0xff]
        %v325 = vld [vmem:[%s262 + $0x18] sm:$0xff]
        %v326 = vld [vmem:[%s262 + $0x20] sm:$0xff]
        %v327 = vld [vmem:[%s262 + $0x28] sm:$0xff]
        %v328 = vld [vmem:[%s262 + $0x30] sm:$0xff]
        %v329 = vld [vmem:[%s262 + $0x38] sm:$0xff]
        %v330 = vld [vmem:[%s262 + $0x40] sm:$0xff]
        %v331 = vld [vmem:[%s262 + $0x48] sm:$0xff]
        %v332 = vld [vmem:[%s262 + $0x50] sm:$0xff]
        %v333 = vld [vmem:[%s262 + $0x58] sm:$0xff]
        %v334 = vld [vmem:[%s262 + $0x60] sm:$0xff]
        %v335 = vld [vmem:[%s262 + $0x68] sm:$0xff]
        %v336 = vld [vmem:[%s262 + $0x70] sm:$0xff]
        %v337 = vld [vmem:[%s262 + $0x78] sm:$0xff]
        %v338 = vld [vmem:[%s262 + $0x80] sm:$0xff]
        %v339 = vld [vmem:[%s262 + $0x88] sm:$0xff]
        %v340 = vld [vmem:[%s262 + $0x90] sm:$0xff]
        %v341 = vld [vmem:[%s262 + $0x98] sm:$0xff]
        %v342 = vld [vmem:[%s262 + $0xa0] sm:$0xff]
        %v343 = vld [vmem:[%s262 + $0xa8] sm:$0xff]
        %v344 = vld [vmem:[%s262 + $0xb0] sm:$0xff]
        %v345 = vld [vmem:[%s262 + $0xb8] sm:$0xff]
        %v346 = vld [vmem:[%s262 + $0xc0] sm:$0xff]
        %v347 = vld [vmem:[%s262 + $0xc8] sm:$0xff]
        %v348 = vld [vmem:[%s262 + $0xd0] sm:$0xff]
        %v349 = vld [vmem:[%s262 + $0xd8] sm:$0xff]
        %v350 = vld [vmem:[%s262 + $0xe0] sm:$0xff]
        %v351 = vld [vmem:[%s262 + $0xe8] sm:$0xff]
        %v352 = vld [vmem:[%s262 + $0xf0] sm:$0xff]
        %v353 = vld [vmem:[%s262 + $0xf8] sm:$0xff]
        %v354 = vld [vmem:[#allocation2] sm:$0xff]
        %v355 = vld [vmem:[#allocation2 + $0x8] sm:$0xff]
        %v356 = vld [vmem:[#allocation2 + $0x10] sm:$0xff]
        %v357 = vld [vmem:[#allocation2 + $0x18] sm:$0xff]
        %v358 = vld [vmem:[#allocation2 + $0x20] sm:$0xff]
        %v359 = vld [vmem:[#allocation2 + $0x28] sm:$0xff]
        %v360 = vld [vmem:[#allocation2 + $0x30] sm:$0xff]
        %v361 = vld [vmem:[#allocation2 + $0x38] sm:$0xff]
        %v362 = vld [vmem:[#allocation2 + $0x40] sm:$0xff]
        %v363 = vld [vmem:[#allocation2 + $0x48] sm:$0xff]
        %v364 = vld [vmem:[#allocation2 + $0x50] sm:$0xff]
        %v365 = vld [vmem:[#allocation2 + $0x58] sm:$0xff]
        %v366 = vld [vmem:[#allocation2 + $0x60] sm:$0xff]
        %v367 = vld [vmem:[#allocation2 + $0x68] sm:$0xff]
        %v368 = vld [vmem:[#allocation2 + $0x70] sm:$0xff]
        %v369 = vld [vmem:[#allocation2 + $0x78] sm:$0xff]
        %v370 = vld [vmem:[#allocation6] sm:$0xf]
        %v371 = vld [vmem:[#allocation6 + $0x4] sm:$0xf]
        %v372 = vld [vmem:[#allocation6 + $0x8] sm:$0xf]
        %v373 = vld [vmem:[#allocation6 + $0xc] sm:$0xf]
        %v374 = vld [vmem:[#allocation6 + $0x10] sm:$0xf]
        %v375 = vld [vmem:[#allocation6 + $0x14] sm:$0xf]
        %v376 = vld [vmem:[#allocation6 + $0x18] sm:$0xf]
        %v377 = vld [vmem:[#allocation6 + $0x1c] sm:$0xf]
        %v378 = vld [vmem:[#allocation6 + $0x20] sm:$0xf]
        %v379 = vld [vmem:[#allocation6 + $0x24] sm:$0xf]
        %v380 = vld [vmem:[#allocation6 + $0x28] sm:$0xf]
        %v381 = vld [vmem:[#allocation6 + $0x2c] sm:$0xf]
        %v382 = vld [vmem:[#allocation6 + $0x30] sm:$0xf]
        %v383 = vld [vmem:[#allocation6 + $0x34] sm:$0xf]
        %v384 = vld [vmem:[#allocation6 + $0x38] sm:$0xf]
        %v385 = vld [vmem:[#allocation6 + $0x3c] sm:$0xf]
        %v386 = vld [vmem:[#allocation6 + $0x40] sm:$0xf]
        %v387 = vld [vmem:[#allocation6 + $0x44] sm:$0xf]
        %v388 = vld [vmem:[#allocation6 + $0x48] sm:$0xf]
        %v389 = vld [vmem:[#allocation6 + $0x4c] sm:$0xf]
        %v390 = vld [vmem:[#allocation6 + $0x50] sm:$0xf]
        %v391 = vld [vmem:[#allocation6 + $0x54] sm:$0xf]
        %v392 = vld [vmem:[#allocation6 + $0x58] sm:$0xf]
        %v393 = vld [vmem:[#allocation6 + $0x5c] sm:$0xf]
        %v394 = vld [vmem:[#allocation6 + $0x60] sm:$0xf]
        %v395 = vld [vmem:[#allocation6 + $0x64] sm:$0xf]
        %v396 = vld [vmem:[#allocation6 + $0x68] sm:$0xf]
        %v397 = vld [vmem:[#allocation6 + $0x6c] sm:$0xf]
        %v398 = vld [vmem:[#allocation6 + $0x70] sm:$0xf]
        %v399 = vld [vmem:[#allocation6 + $0x74] sm:$0xf]
        %v400 = vld [vmem:[#allocation6 + $0x78] sm:$0xf]
        %v401 = vld [vmem:[#allocation6 + $0x7c] sm:$0xf]
        %v402 = vld [vmem:[#allocation6 + $0x80] sm:$0xf]
        %v403 = vld [vmem:[#allocation6 + $0x84] sm:$0xf]
        %v404 = vld [vmem:[#allocation6 + $0x88] sm:$0xf]
        %v405 = vld [vmem:[#allocation6 + $0x8c] sm:$0xf]
        %v406 = vld [vmem:[#allocation6 + $0x90] sm:$0xf]
        %v407 = vld [vmem:[#allocation6 + $0x94] sm:$0xf]
        %v408 = vld [vmem:[#allocation6 + $0x98] sm:$0xf]
        %v409 = vld [vmem:[#allocation6 + $0x9c] sm:$0xf]
        %v410 = vld [vmem:[#allocation6 + $0xa0] sm:$0xf]
        %v411 = vld [vmem:[#allocation6 + $0xa4] sm:$0xf]
        %v412 = vld [vmem:[#allocation6 + $0xa8] sm:$0xf]
        %v413 = vld [vmem:[#allocation6 + $0xac] sm:$0xf]
        %v414 = vld [vmem:[#allocation6 + $0xb0] sm:$0xf]
        %v415 = vld [vmem:[#allocation6 + $0xb4] sm:$0xf]
        %v416 = vld [vmem:[#allocation6 + $0xb8] sm:$0xf]
        %v417 = vld [vmem:[#allocation6 + $0xbc] sm:$0xf]
        %v418 = vld [vmem:[#allocation6 + $0xc0] sm:$0xf]
        %v419 = vld [vmem:[#allocation6 + $0xc4] sm:$0xf]
        %v420 = vld [vmem:[#allocation6 + $0xc8] sm:$0xf]
        %v421 = vld [vmem:[#allocation6 + $0xcc] sm:$0xf]
        %v422 = vld [vmem:[#allocation6 + $0xd0] sm:$0xf]
        %v423 = vld [vmem:[#allocation6 + $0xd4] sm:$0xf]
        %v424 = vld [vmem:[#allocation6 + $0xd8] sm:$0xf]
        %v425 = vld [vmem:[#allocation6 + $0xdc] sm:$0xf]
        %v426 = vld [vmem:[#allocation6 + $0xe0] sm:$0xf]
        %v427 = vld [vmem:[#allocation6 + $0xe4] sm:$0xf]
        %v428 = vld [vmem:[#allocation6 + $0xe8] sm:$0xf]
        %v429 = vld [vmem:[#allocation6 + $0xec] sm:$0xf]
        %v430 = vld [vmem:[#allocation6 + $0xf0] sm:$0xf]
        %v431 = vld [vmem:[#allocation6 + $0xf4] sm:$0xf]
        %v432 = vld [vmem:[#allocation6 + $0xf8] sm:$0xf]
        %v433 = vld [vmem:[#allocation6 + $0xfc] sm:$0xf]
        %v466 = vunpack.c.l.b16 %v322
        %v467 = vunpack.c.h.b16 %v322
        %v468 = vunpack.c.l.b16 %v323
        %v469 = vunpack.c.h.b16 %v323
        %v470 = vunpack.c.l.b16 %v324
        %v471 = vunpack.c.h.b16 %v324
        %v472 = vunpack.c.l.b16 %v325
        %v473 = vunpack.c.h.b16 %v325
        %v474 = vunpack.c.l.b16 %v326
        %v475 = vunpack.c.h.b16 %v326
        %v476 = vunpack.c.l.b16 %v327
        %v477 = vunpack.c.h.b16 %v327
        %v478 = vunpack.c.l.b16 %v328
        %v479 = vunpack.c.h.b16 %v328
        %v480 = vunpack.c.l.b16 %v329
        %v481 = vunpack.c.h.b16 %v329
        %v482 = vunpack.c.l.b16 %v330
        %v483 = vunpack.c.h.b16 %v330
        %v484 = vunpack.c.l.b16 %v331
        %v485 = vunpack.c.h.b16 %v331
        %v486 = vunpack.c.l.b16 %v332
        %v487 = vunpack.c.h.b16 %v332
        %v488 = vunpack.c.l.b16 %v333
        %v489 = vunpack.c.h.b16 %v333
        %v490 = vunpack.c.l.b16 %v334
        %v491 = vunpack.c.h.b16 %v334
        %v492 = vunpack.c.l.b16 %v335
        %v493 = vunpack.c.h.b16 %v335
        %v494 = vunpack.c.l.b16 %v336
        %v495 = vunpack.c.h.b16 %v336
        %v496 = vunpack.c.l.b16 %v337
        %v497 = vunpack.c.h.b16 %v337
        %v498 = vunpack.c.l.b16 %v338
        %v499 = vunpack.c.h.b16 %v338
        %v500 = vunpack.c.l.b16 %v339
        %v501 = vunpack.c.h.b16 %v339
        %v502 = vunpack.c.l.b16 %v340
        %v503 = vunpack.c.h.b16 %v340
        %v504 = vunpack.c.l.b16 %v341
        %v505 = vunpack.c.h.b16 %v341
        %v506 = vunpack.c.l.b16 %v342
        %v507 = vunpack.c.h.b16 %v342
        %v508 = vunpack.c.l.b16 %v343
        %v509 = vunpack.c.h.b16 %v343
        %v510 = vunpack.c.l.b16 %v344
        %v511 = vunpack.c.h.b16 %v344
        %v512 = vunpack.c.l.b16 %v345
        %v513 = vunpack.c.h.b16 %v345
        %v514 = vunpack.c.l.b16 %v346
        %v515 = vunpack.c.h.b16 %v346
        %v516 = vunpack.c.l.b16 %v347
        %v517 = vunpack.c.h.b16 %v347
        %v518 = vunpack.c.l.b16 %v348
        %v519 = vunpack.c.h.b16 %v348
        %v520 = vunpack.c.l.b16 %v349
        %v521 = vunpack.c.h.b16 %v349
        %v522 = vunpack.c.l.b16 %v350
        %v523 = vunpack.c.h.b16 %v350
        %v524 = vunpack.c.l.b16 %v351
        %v525 = vunpack.c.h.b16 %v351
        %v526 = vunpack.c.l.b16 %v352
        %v527 = vunpack.c.h.b16 %v352
        %v528 = vunpack.c.l.b16 %v353
        %v529 = vunpack.c.h.b16 %v353
        %v530 = vpack.c.b16 %v470, %v466
        %v531 = vpack.c.b16 %v471, %v467
        %v532 = vpack.c.b16 %v472, %v468
        %v533 = vpack.c.b16 %v473, %v469
        %v534 = vpack.c.b16 %v478, %v474
        %v535 = vpack.c.b16 %v479, %v475
        %v536 = vpack.c.b16 %v480, %v476
        %v537 = vpack.c.b16 %v481, %v477
        %v538 = vpack.c.b16 %v486, %v482
        %v539 = vpack.c.b16 %v487, %v483
        %v540 = vpack.c.b16 %v488, %v484
        %v541 = vpack.c.b16 %v489, %v485
        %v542 = vpack.c.b16 %v494, %v490
        %v543 = vpack.c.b16 %v495, %v491
        %v544 = vpack.c.b16 %v496, %v492
        %v545 = vpack.c.b16 %v497, %v493
        %v546 = vpack.c.b16 %v502, %v498
        %v547 = vpack.c.b16 %v503, %v499
        %v548 = vpack.c.b16 %v504, %v500
        %v549 = vpack.c.b16 %v505, %v501
        %v550 = vpack.c.b16 %v510, %v506
        %v551 = vpack.c.b16 %v511, %v507
        %v552 = vpack.c.b16 %v512, %v508
        %v553 = vpack.c.b16 %v513, %v509
        %v554 = vpack.c.b16 %v518, %v514
        %v555 = vpack.c.b16 %v519, %v515
        %v556 = vpack.c.b16 %v520, %v516
        %v557 = vpack.c.b16 %v521, %v517
        %v558 = vpack.c.b16 %v526, %v522
        %v559 = vpack.c.b16 %v527, %v523
        %v560 = vpack.c.b16 %v528, %v524
        %v561 = vpack.c.b16 %v529, %v525
        %v658 = vunpack.c.l.b16 %v370
        %v659 = vunpack.c.l.b16 %v371
        %v660 = vunpack.c.l.b16 %v372
        %v661 = vunpack.c.l.b16 %v373
        %v662 = vunpack.c.l.b16 %v374
        %v663 = vunpack.c.l.b16 %v375
        %v664 = vunpack.c.l.b16 %v376
        %v665 = vunpack.c.l.b16 %v377
        %v666 = vunpack.c.l.b16 %v378
        %v667 = vunpack.c.l.b16 %v379
        %v668 = vunpack.c.l.b16 %v380
        %v669 = vunpack.c.l.b16 %v381
        %v670 = vunpack.c.l.b16 %v382
        %v671 = vunpack.c.l.b16 %v383
        %v672 = vunpack.c.l.b16 %v384
        %v673 = vunpack.c.l.b16 %v385
        %v674 = vunpack.c.l.b16 %v386
        %v675 = vunpack.c.l.b16 %v387
        %v676 = vunpack.c.l.b16 %v388
        %v677 = vunpack.c.l.b16 %v389
        %v678 = vunpack.c.l.b16 %v390
        %v679 = vunpack.c.l.b16 %v391
        %v680 = vunpack.c.l.b16 %v392
        %v681 = vunpack.c.l.b16 %v393
        %v682 = vunpack.c.l.b16 %v394
        %v683 = vunpack.c.l.b16 %v395
        %v684 = vunpack.c.l.b16 %v396
        %v685 = vunpack.c.l.b16 %v397
        %v686 = vunpack.c.l.b16 %v398
        %v687 = vunpack.c.l.b16 %v399
        %v688 = vunpack.c.l.b16 %v400
        %v689 = vunpack.c.l.b16 %v401
        %v690 = vunpack.c.l.b16 %v402
        %v691 = vunpack.c.l.b16 %v403
        %v692 = vunpack.c.l.b16 %v404
        %v693 = vunpack.c.l.b16 %v405
        %v694 = vunpack.c.l.b16 %v406
        %v695 = vunpack.c.l.b16 %v407
        %v696 = vunpack.c.l.b16 %v408
        %v697 = vunpack.c.l.b16 %v409
        %v698 = vunpack.c.l.b16 %v410
        %v699 = vunpack.c.l.b16 %v411
        %v700 = vunpack.c.l.b16 %v412
        %v701 = vunpack.c.l.b16 %v413
        %v702 = vunpack.c.l.b16 %v414
        %v703 = vunpack.c.l.b16 %v415
        %v704 = vunpack.c.l.b16 %v416
        %v705 = vunpack.c.l.b16 %v417
        %v706 = vunpack.c.l.b16 %v418
        %v707 = vunpack.c.l.b16 %v419
        %v708 = vunpack.c.l.b16 %v420
        %v709 = vunpack.c.l.b16 %v421
        %v710 = vunpack.c.l.b16 %v422
        %v711 = vunpack.c.l.b16 %v423
        %v712 = vunpack.c.l.b16 %v424
        %v713 = vunpack.c.l.b16 %v425
        %v714 = vunpack.c.l.b16 %v426
        %v715 = vunpack.c.l.b16 %v427
        %v716 = vunpack.c.l.b16 %v428
        %v717 = vunpack.c.l.b16 %v429
        %v718 = vunpack.c.l.b16 %v430
        %v719 = vunpack.c.l.b16 %v431
        %v720 = vunpack.c.l.b16 %v432
        %v721 = vunpack.c.l.b16 %v433
        %v722 = vpack.c.b16 %v659, %v658
        %v723 = vpack.c.b16 %v661, %v660
        %v724 = vpack.c.b16 %v663, %v662
        %v725 = vpack.c.b16 %v665, %v664
        %v726 = vpack.c.b16 %v667, %v666
        %v727 = vpack.c.b16 %v669, %v668
        %v728 = vpack.c.b16 %v671, %v670
        %v729 = vpack.c.b16 %v673, %v672
        %v730 = vpack.c.b16 %v675, %v674
        %v731 = vpack.c.b16 %v677, %v676
        %v732 = vpack.c.b16 %v679, %v678
        %v733 = vpack.c.b16 %v681, %v680
        %v734 = vpack.c.b16 %v683, %v682
        %v735 = vpack.c.b16 %v685, %v684
        %v736 = vpack.c.b16 %v687, %v686
        %v737 = vpack.c.b16 %v689, %v688
        %v738 = vpack.c.b16 %v691, %v690
        %v739 = vpack.c.b16 %v693, %v692
        %v740 = vpack.c.b16 %v695, %v694
        %v741 = vpack.c.b16 %v697, %v696
        %v742 = vpack.c.b16 %v699, %v698
        %v743 = vpack.c.b16 %v701, %v700
        %v744 = vpack.c.b16 %v703, %v702
        %v745 = vpack.c.b16 %v705, %v704
        %v746 = vpack.c.b16 %v707, %v706
        %v747 = vpack.c.b16 %v709, %v708
        %v748 = vpack.c.b16 %v711, %v710
        %v749 = vpack.c.b16 %v713, %v712
        %v750 = vpack.c.b16 %v715, %v714
        %v751 = vpack.c.b16 %v717, %v716
        %v752 = vpack.c.b16 %v719, %v718
        %v753 = vpack.c.b16 %v721, %v720
        %786 = vmatprep.subr.bf16.mxu0 0
        %787 = vmatpush1.bf16.msra.mxu0 %v722
        %788 = vmatprep.subr.bf16.mxu0 0
        %789 = vmatpush1.bf16.msra.mxu0 %v723
        %790 = vmatprep.subr.bf16.mxu0 0
        %791 = vmatpush1.bf16.msra.mxu0 %v724
        %792 = vmatprep.subr.bf16.mxu0 0
        %793 = vmatpush1.bf16.msra.mxu0 %v725
        %794 = vmatprep.subr.bf16.mxu0 0
        %795 = vmatpush1.bf16.msra.mxu0 %v726
        %796 = vmatprep.subr.bf16.mxu0 0
        %797 = vmatpush1.bf16.msra.mxu0 %v727
        %798 = vmatprep.subr.bf16.mxu0 0
        %799 = vmatpush1.bf16.msra.mxu0 %v728
        %800 = vmatprep.subr.bf16.mxu0 0
        %801 = vmatpush1.bf16.msra.mxu0 %v729
        %802 = vmatprep.subr.bf16.mxu0 0
        %803 = vmatpush1.bf16.msra.mxu0 %v730
        %804 = vmatprep.subr.bf16.mxu0 0
        %805 = vmatpush1.bf16.msra.mxu0 %v731
        %806 = vmatprep.subr.bf16.mxu0 0
        %807 = vmatpush1.bf16.msra.mxu0 %v732
        %808 = vmatprep.subr.bf16.mxu0 0
        %809 = vmatpush1.bf16.msra.mxu0 %v733
        %810 = vmatprep.subr.bf16.mxu0 0
        %811 = vmatpush1.bf16.msra.mxu0 %v734
        %812 = vmatprep.subr.bf16.mxu0 0
        %813 = vmatpush1.bf16.msra.mxu0 %v735
        %814 = vmatprep.subr.bf16.mxu0 0
        %815 = vmatpush1.bf16.msra.mxu0 %v736
        %816 = vmatprep.subr.bf16.mxu0 0
        %817 = vmatpush1.bf16.msra.mxu0 %v737
        %818 = vmatprep.mubr.bf16.mxu0 %v531
        %819 = vmatmul.mubr.bf16.gmra.mrb[0].mxu0 %v530
        %v820 = vpop.f32.mrb[0].mxu0
        %v821 = vadd.f32 0.0, %v820
        %v822 = vpop.f32.mrb[0].mxu0
        %v823 = vpop.f32.mrb[0].mxu0
        %v824 = vadd.f32 0.0, %v823
        %v825 = vpop.f32.mrb[0].mxu0
        %826 = vmatprep.mubr.bf16.mxu0 %v535
        %827 = vmatmul.mubr.bf16.gmra.mrb[0].mxu0 %v534
        %v828 = vpop.f32.mrb[0].mxu0
        %v829 = vadd.f32 0.0, %v828
        %v830 = vpop.f32.mrb[0].mxu0
        %v831 = vpop.f32.mrb[0].mxu0
        %v832 = vadd.f32 0.0, %v831
        %v833 = vpop.f32.mrb[0].mxu0
        %834 = vmatprep.mubr.bf16.mxu0 %v539
        %835 = vmatmul.mubr.bf16.gmra.mrb[0].mxu0 %v538
        %v836 = vpop.f32.mrb[0].mxu0
        %v837 = vadd.f32 0.0, %v836
        %v838 = vpop.f32.mrb[0].mxu0
        %v839 = vpop.f32.mrb[0].mxu0
        %v840 = vadd.f32 0.0, %v839
        %v841 = vpop.f32.mrb[0].mxu0
        %842 = vmatprep.mubr.bf16.mxu0 %v543
        %843 = vmatmul.mubr.bf16.gmra.mrb[0].mxu0 %v542
        %v844 = vpop.f32.mrb[0].mxu0
        %v845 = vadd.f32 0.0, %v844
        %v846 = vpop.f32.mrb[0].mxu0
        %v847 = vpop.f32.mrb[0].mxu0
        %v848 = vadd.f32 0.0, %v847
        %v849 = vpop.f32.mrb[0].mxu0
        %850 = vmatprep.mubr.bf16.mxu0 %v547
        %851 = vmatmul.mubr.bf16.gmra.mrb[0].mxu0 %v546
        %v852 = vpop.f32.mrb[0].mxu0
        %v853 = vadd.f32 0.0, %v852
        %v854 = vpop.f32.mrb[0].mxu0
        %v855 = vpop.f32.mrb[0].mxu0
        %v856 = vadd.f32 0.0, %v855
        %v857 = vpop.f32.mrb[0].mxu0
        %858 = vmatprep.mubr.bf16.mxu0 %v551
        %859 = vmatmul.mubr.bf16.gmra.mrb[0].mxu0 %v550
        %v860 = vpop.f32.mrb[0].mxu0
        %v861 = vadd.f32 0.0, %v860
        %v862 = vpop.f32.mrb[0].mxu0
        %v863 = vpop.f32.mrb[0].mxu0
        %v864 = vadd.f32 0.0, %v863
        %v865 = vpop.f32.mrb[0].mxu0
        %866 = vmatprep.mubr.bf16.mxu0 %v555
        %867 = vmatmul.mubr.bf16.gmra.mrb[0].mxu0 %v554
        %v868 = vpop.f32.mrb[0].mxu0
        %v869 = vadd.f32 0.0, %v868
        %v870 = vpop.f32.mrb[0].mxu0
        %v871 = vpop.f32.mrb[0].mxu0
        %v872 = vadd.f32 0.0, %v871
        %v873 = vpop.f32.mrb[0].mxu0
        %874 = vmatprep.mubr.bf16.mxu0 %v559
        %875 = vmatmul.mubr.bf16.gmra.mrb[0].mxu0 %v558
        %v876 = vpop.f32.mrb[0].mxu0
        %v877 = vadd.f32 0.0, %v876
        %v878 = vpop.f32.mrb[0].mxu0
        %v879 = vpop.f32.mrb[0].mxu0
        %v880 = vadd.f32 0.0, %v879
        %v881 = vpop.f32.mrb[0].mxu0
        %882 = vdwg.mxu0
        %883 = vmatprep.subr.bf16.mxu0 0
        %884 = vmatpush1.bf16.msra.mxu0 %v738
        %885 = vmatprep.subr.bf16.mxu0 0
        %886 = vmatpush1.bf16.msra.mxu0 %v739
        %887 = vmatprep.subr.bf16.mxu0 0
        %888 = vmatpush1.bf16.msra.mxu0 %v740
        %889 = vmatprep.subr.bf16.mxu0 0
        %890 = vmatpush1.bf16.msra.mxu0 %v741
        %891 = vmatprep.subr.bf16.mxu0 0
        %892 = vmatpush1.bf16.msra.mxu0 %v742
        %893 = vmatprep.subr.bf16.mxu0 0
        %894 = vmatpush1.bf16.msra.mxu0 %v743
        %895 = vmatprep.subr.bf16.mxu0 0
        %896 = vmatpush1.bf16.msra.mxu0 %v744
        %897 = vmatprep.subr.bf16.mxu0 0
        %898 = vmatpush1.bf16.msra.mxu0 %v745
        %899 = vmatprep.subr.bf16.mxu0 0
        %900 = vmatpush1.bf16.msra.mxu0 %v746
        %901 = vmatprep.subr.bf16.mxu0 0
        %902 = vmatpush1.bf16.msra.mxu0 %v747
        %903 = vmatprep.subr.bf16.mxu0 0
        %904 = vmatpush1.bf16.msra.mxu0 %v748
        %905 = vmatprep.subr.bf16.mxu0 0
        %906 = vmatpush1.bf16.msra.mxu0 %v749
        %907 = vmatprep.subr.bf16.mxu0 0
        %908 = vmatpush1.bf16.msra.mxu0 %v750
        %909 = vmatprep.subr.bf16.mxu0 0
        %910 = vmatpush1.bf16.msra.mxu0 %v751
        %911 = vmatprep.subr.bf16.mxu0 0
        %912 = vmatpush1.bf16.msra.mxu0 %v752
        %913 = vmatprep.subr.bf16.mxu0 0
        %914 = vmatpush1.bf16.msra.mxu0 %v753
        %915 = vmatprep.mubr.bf16.mxu0 %v533
        %916 = vmatmul.mubr.bf16.gmra.mrb[0].mxu0 %v532
        %v917 = vpop.f32.mrb[0].mxu0
        %v918 = vadd.f32 %v821, %v917
        %v919 = vpop.f32.mrb[0].mxu0
        %v920 = vpop.f32.mrb[0].mxu0
        %v921 = vadd.f32 %v824, %v920
        %v922 = vpop.f32.mrb[0].mxu0
        %923 = vmatprep.mubr.bf16.mxu0 %v537
        %924 = vmatmul.mubr.bf16.gmra.mrb[0].mxu0 %v536
        %v925 = vpop.f32.mrb[0].mxu0
        %v926 = vadd.f32 %v829, %v925
        %v927 = vpop.f32.mrb[0].mxu0
        %v928 = vpop.f32.mrb[0].mxu0
        %v929 = vadd.f32 %v832, %v928
        %v930 = vpop.f32.mrb[0].mxu0
        %931 = vmatprep.mubr.bf16.mxu0 %v541
        %932 = vmatmul.mubr.bf16.gmra.mrb[0].mxu0 %v540
        %v933 = vpop.f32.mrb[0].mxu0
        %v934 = vadd.f32 %v837, %v933
        %v935 = vpop.f32.mrb[0].mxu0
        %v936 = vpop.f32.mrb[0].mxu0
        %v937 = vadd.f32 %v840, %v936
        %v938 = vpop.f32.mrb[0].mxu0
        %939 = vmatprep.mubr.bf16.mxu0 %v545
        %940 = vmatmul.mubr.bf16.gmra.mrb[0].mxu0 %v544
        %v941 = vpop.f32.mrb[0].mxu0
        %v942 = vadd.f32 %v845, %v941
        %v943 = vpop.f32.mrb[0].mxu0
        %v944 = vpop.f32.mrb[0].mxu0
        %v945 = vadd.f32 %v848, %v944
        %v946 = vpop.f32.mrb[0].mxu0
        %947 = vmatprep.mubr.bf16.mxu0 %v549
        %948 = vmatmul.mubr.bf16.gmra.mrb[0].mxu0 %v548
        %v949 = vpop.f32.mrb[0].mxu0
        %v950 = vadd.f32 %v853, %v949
        %v951 = vpop.f32.mrb[0].mxu0
        %v952 = vpop.f32.mrb[0].mxu0
        %v953 = vadd.f32 %v856, %v952
        %v954 = vpop.f32.mrb[0].mxu0
        %955 = vmatprep.mubr.bf16.mxu0 %v553
        %956 = vmatmul.mubr.bf16.gmra.mrb[0].mxu0 %v552
        %v957 = vpop.f32.mrb[0].mxu0
        %v958 = vadd.f32 %v861, %v957
        %v959 = vpop.f32.mrb[0].mxu0
        %v960 = vpop.f32.mrb[0].mxu0
        %v961 = vadd.f32 %v864, %v960
        %v962 = vpop.f32.mrb[0].mxu0
        %963 = vmatprep.mubr.bf16.mxu0 %v557
        %964 = vmatmul.mubr.bf16.gmra.mrb[0].mxu0 %v556
        %v965 = vpop.f32.mrb[0].mxu0
        %v966 = vadd.f32 %v869, %v965
        %v967 = vpop.f32.mrb[0].mxu0
        %v968 = vpop.f32.mrb[0].mxu0
        %v969 = vadd.f32 %v872, %v968
        %v970 = vpop.f32.mrb[0].mxu0
        %971 = vmatprep.mubr.bf16.mxu0 %v561
        %972 = vmatmul.mubr.bf16.gmra.mrb[0].mxu0 %v560
        %v973 = vpop.f32.mrb[0].mxu0
        %v974 = vadd.f32 %v877, %v973
        %v975 = vpop.f32.mrb[0].mxu0
        %v976 = vpop.f32.mrb[0].mxu0
        %v977 = vadd.f32 %v880, %v976
        %v978 = vpop.f32.mrb[0].mxu0
        %979 = vdwg.mxu0
        %v980 = vadd.f32 %v354, %v918
        %v981 = vadd.f32 %v355, %v921
        %v982 = vadd.f32 %v356, %v926
        %v983 = vadd.f32 %v357, %v929
        %v984 = vadd.f32 %v358, %v934
        %v985 = vadd.f32 %v359, %v937
        %v986 = vadd.f32 %v360, %v942
        %v987 = vadd.f32 %v361, %v945
        %v988 = vadd.f32 %v362, %v950
        %v989 = vadd.f32 %v363, %v953
        %v990 = vadd.f32 %v364, %v958
        %v991 = vadd.f32 %v365, %v961
        %v992 = vadd.f32 %v366, %v966
        %v993 = vadd.f32 %v367, %v969
        %v994 = vadd.f32 %v368, %v974
        %v995 = vadd.f32 %v369, %v977
        %996 = vst [vmem:[#allocation2] sm:$0xff] %v980
        %997 = vst [vmem:[#allocation2 + $0x8] sm:$0xff] %v981
        %998 = vst [vmem:[#allocation2 + $0x10] sm:$0xff] %v982
        %999 = vst [vmem:[#allocation2 + $0x18] sm:$0xff] %v983
        %1000 = vst [vmem:[#allocation2 + $0x20] sm:$0xff] %v984
        %1001 = vst [vmem:[#allocation2 + $0x28] sm:$0xff] %v985
        %1002 = vst [vmem:[#allocation2 + $0x30] sm:$0xff] %v986
        %1003 = vst [vmem:[#allocation2 + $0x38] sm:$0xff] %v987
        %1004 = vst [vmem:[#allocation2 + $0x40] sm:$0xff] %v988
        %1005 = vst [vmem:[#allocation2 + $0x48] sm:$0xff] %v989
        %1006 = vst [vmem:[#allocation2 + $0x50] sm:$0xff] %v990
        %1007 = vst [vmem:[#allocation2 + $0x58] sm:$0xff] %v991
        %1008 = vst [vmem:[#allocation2 + $0x60] sm:$0xff] %v992
        %1009 = vst [vmem:[#allocation2 + $0x68] sm:$0xff] %v993
        %1010 = vst [vmem:[#allocation2 + $0x70] sm:$0xff] %v994
        %1011 = vst [vmem:[#allocation2 + $0x78] sm:$0xff] %v995
        // Predicated region
        $region57: #{tpu_custom_call.1} parent=39 // pred_check
          %p1012 = pneg %p302
        $region58: #{tpu_custom_call.1} parent=39 // pred_check_branch
          %1014 = sbr.rel (%p1012) target = $region60
        $region59: #{tpu_custom_call.1} parent=39 // pred_region
          %v1015 = vld [vmem:[#allocation2] sm:$0xff]
          %v1016 = vld [vmem:[#allocation2 + $0x8] sm:$0xff]
          %v1017 = vld [vmem:[#allocation2 + $0x10] sm:$0xff]
          %v1018 = vld [vmem:[#allocation2 + $0x18] sm:$0xff]
          %v1019 = vld [vmem:[#allocation2 + $0x20] sm:$0xff]
          %v1020 = vld [vmem:[#allocation2 + $0x28] sm:$0xff]
          %v1021 = vld [vmem:[#allocation2 + $0x30] sm:$0xff]
          %v1022 = vld [vmem:[#allocation2 + $0x38] sm:$0xff]
          %v1023 = vld [vmem:[#allocation2 + $0x40] sm:$0xff]
          %v1024 = vld [vmem:[#allocation2 + $0x48] sm:$0xff]
          %v1025 = vld [vmem:[#allocation2 + $0x50] sm:$0xff]
          %v1026 = vld [vmem:[#allocation2 + $0x58] sm:$0xff]
          %v1027 = vld [vmem:[#allocation2 + $0x60] sm:$0xff]
          %v1028 = vld [vmem:[#allocation2 + $0x68] sm:$0xff]
          %v1029 = vld [vmem:[#allocation2 + $0x70] sm:$0xff]
          %v1030 = vld [vmem:[#allocation2 + $0x78] sm:$0xff]
          %v1031 = vld [vmem:[%s2] sm:$0x1]
          %v1033 = vlaneseq
          %v1034 = vshrl.u32 %v1033, 7
          %v1035 = vsub.s32 0, %v1034
          %v1036 = vrot.slane %v1031, %v1035
          %v1038 = vadd.f32 %v1015, %v1036
          %v1039 = vadd.f32 %v1016, %v1036
          %v1040 = vadd.f32 %v1017, %v1036
          %v1041 = vadd.f32 %v1018, %v1036
          %v1042 = vadd.f32 %v1019, %v1036
          %v1043 = vadd.f32 %v1020, %v1036
          %v1044 = vadd.f32 %v1021, %v1036
          %v1045 = vadd.f32 %v1022, %v1036
          %v1046 = vadd.f32 %v1023, %v1036
          %v1047 = vadd.f32 %v1024, %v1036
          %v1048 = vadd.f32 %v1025, %v1036
          %v1049 = vadd.f32 %v1026, %v1036
          %v1050 = vadd.f32 %v1027, %v1036
          %v1051 = vadd.f32 %v1028, %v1036
          %v1052 = vadd.f32 %v1029, %v1036
          %v1053 = vadd.f32 %v1030, %v1036
          %v1054 = vmax.f32 %v1038, 0.0
          %v1055 = vmax.f32 %v1039, 0.0
          %v1056 = vmax.f32 %v1040, 0.0
          %v1057 = vmax.f32 %v1041, 0.0
          %v1058 = vmax.f32 %v1042, 0.0
          %v1059 = vmax.f32 %v1043, 0.0
          %v1060 = vmax.f32 %v1044, 0.0
          %v1061 = vmax.f32 %v1045, 0.0
          %v1062 = vmax.f32 %v1046, 0.0
          %v1063 = vmax.f32 %v1047, 0.0
          %v1064 = vmax.f32 %v1048, 0.0
          %v1065 = vmax.f32 %v1049, 0.0
          %v1066 = vmax.f32 %v1050, 0.0
          %v1067 = vmax.f32 %v1051, 0.0
          %v1068 = vmax.f32 %v1052, 0.0
          %v1069 = vmax.f32 %v1053, 0.0
          %v1070 = vld [vmem:[#allocation8] sm:$0xff]
          %v1071 = vld [vmem:[#allocation8 + $0x8] sm:$0xff]
          %v1072 = vld [vmem:[#allocation8 + $0x10] sm:$0xff]
          %v1073 = vld [vmem:[#allocation8 + $0x18] sm:$0xff]
          %v1074 = vld [vmem:[#allocation8 + $0x20] sm:$0xff]
          %v1075 = vld [vmem:[#allocation8 + $0x28] sm:$0xff]
          %v1076 = vld [vmem:[#allocation8 + $0x30] sm:$0xff]
          %v1077 = vld [vmem:[#allocation8 + $0x38] sm:$0xff]
          %v1078 = vld [vmem:[#allocation8 + $0x40] sm:$0xff]
          %v1079 = vld [vmem:[#allocation8 + $0x48] sm:$0xff]
          %v1080 = vld [vmem:[#allocation8 + $0x50] sm:$0xff]
          %v1081 = vld [vmem:[#allocation8 + $0x58] sm:$0xff]
          %v1082 = vld [vmem:[#allocation8 + $0x60] sm:$0xff]
          %v1083 = vld [vmem:[#allocation8 + $0x68] sm:$0xff]
          %v1084 = vld [vmem:[#allocation8 + $0x70] sm:$0xff]
          %v1085 = vld [vmem:[#allocation8 + $0x78] sm:$0xff]
          %v1086 = vld [vmem:[%s4] sm:$0x1]
          %v1088 = vlaneseq
          %v1089 = vshrl.u32 %v1088, 7
          %v1090 = vsub.s32 0, %v1089
          %v1091 = vrot.slane %v1086, %v1090
          %1093 = vmatprep.subr.mxu0 0.0
          %1094 = vmatpush1.msra.mxu0 %v1070
          %1095 = vmatprep.subr.mxu0 0.0
          %1096 = vmatpush1.msra.mxu0 %v1071
          %1097 = vmatprep.subr.mxu0 0.0
          %1098 = vmatpush1.msra.mxu0 %v1072
          %1099 = vmatprep.subr.mxu0 0.0
          %1100 = vmatpush1.msra.mxu0 %v1073
          %1101 = vmatprep.subr.mxu0 0.0
          %1102 = vmatpush1.msra.mxu0 %v1074
          %1103 = vmatprep.subr.mxu0 0.0
          %1104 = vmatpush1.msra.mxu0 %v1075
          %1105 = vmatprep.subr.mxu0 0.0
          %1106 = vmatpush1.msra.mxu0 %v1076
          %1107 = vmatprep.subr.mxu0 0.0
          %1108 = vmatpush1.msra.mxu0 %v1077
          %1109 = vmatprep.subr.mxu0 0.0
          %1110 = vmatpush1.msra.mxu0 %v1078
          %1111 = vmatprep.subr.mxu0 0.0
          %1112 = vmatpush1.msra.mxu0 %v1079
          %1113 = vmatprep.subr.mxu0 0.0
          %1114 = vmatpush1.msra.mxu0 %v1080
          %1115 = vmatprep.subr.mxu0 0.0
          %1116 = vmatpush1.msra.mxu0 %v1081
          %1117 = vmatprep.subr.mxu0 0.0
          %1118 = vmatpush1.msra.mxu0 %v1082
          %1119 = vmatprep.subr.mxu0 0.0
          %1120 = vmatpush1.msra.mxu0 %v1083
          %1121 = vmatprep.subr.mxu0 0.0
          %1122 = vmatpush1.msra.mxu0 %v1084
          %1123 = vmatprep.subr.mxu0 0.0
          %1124 = vmatpush1.msra.mxu0 %v1085
          %1125 = vmatprep.subr.mxu0 0.0
          %1126 = vmatpush1.msra.mxu0 0.0
          %1127 = vmatprep.subr.mxu0 0.0
          %1128 = vmatpush1.msra.mxu0 0.0
          %1129 = vmatprep.subr.mxu0 0.0
          %1130 = vmatpush1.msra.mxu0 0.0
          %1131 = vmatprep.subr.mxu0 0.0
          %1132 = vmatpush1.msra.mxu0 0.0
          %1133 = vmatprep.subr.mxu0 0.0
          %1134 = vmatpush1.msra.mxu0 0.0
          %1135 = vmatprep.subr.mxu0 0.0
          %1136 = vmatpush1.msra.mxu0 0.0
          %1137 = vmatprep.subr.mxu0 0.0
          %1138 = vmatpush1.msra.mxu0 0.0
          %1139 = vmatprep.subr.mxu0 0.0
          %1140 = vmatpush1.msra.mxu0 0.0
          %1141 = vmatprep.subr.mxu0 0.0
          %1142 = vmatpush1.msra.mxu0 0.0
          %1143 = vmatprep.subr.mxu0 0.0
          %1144 = vmatpush1.msra.mxu0 0.0
          %1145 = vmatprep.subr.mxu0 0.0
          %1146 = vmatpush1.msra.mxu0 0.0
          %1147 = vmatprep.subr.mxu0 0.0
          %1148 = vmatpush1.msra.mxu0 0.0
          %1149 = vmatprep.subr.mxu0 0.0
          %1150 = vmatpush1.msra.mxu0 0.0
          %1151 = vmatprep.subr.mxu0 0.0
          %1152 = vmatpush1.msra.mxu0 0.0
          %1153 = vmatprep.subr.mxu0 0.0
          %1154 = vmatpush1.msra.mxu0 0.0
          %1155 = vmatprep.subr.mxu0 0.0
          %1156 = vmatpush1.msra.mxu0 0.0
          %1157 = vmatprep.mubr.f32.mxu0 0.0
          %1158 = vmatmul.mubr.f32.gmra.mrb[0].mxu0 %v1054
          %v1159 = vpop.f32.mrb[0].mxu0
          %v1160 = vadd.f32 %v1091, %v1159
          %v1161 = vpop.f32.mrb[0].mxu0
          %1162 = vmatprep.mubr.f32.mxu0 0.0
          %1163 = vmatmul.mubr.f32.gmra.mrb[0].mxu0 %v1055
          %v1164 = vpop.f32.mrb[0].mxu0
          %v1165 = vadd.f32 %v1091, %v1164
          %v1166 = vpop.f32.mrb[0].mxu0
          %1167 = vmatprep.mubr.f32.mxu0 0.0
          %1168 = vmatmul.mubr.f32.gmra.mrb[0].mxu0 %v1056
          %v1169 = vpop.f32.mrb[0].mxu0
          %v1170 = vadd.f32 %v1091, %v1169
          %v1171 = vpop.f32.mrb[0].mxu0
          %1172 = vmatprep.mubr.f32.mxu0 0.0
          %1173 = vmatmul.mubr.f32.gmra.mrb[0].mxu0 %v1057
          %v1174 = vpop.f32.mrb[0].mxu0
          %v1175 = vadd.f32 %v1091, %v1174
          %v1176 = vpop.f32.mrb[0].mxu0
          %1177 = vmatprep.mubr.f32.mxu0 0.0
          %1178 = vmatmul.mubr.f32.gmra.mrb[0].mxu0 %v1058
          %v1179 = vpop.f32.mrb[0].mxu0
          %v1180 = vadd.f32 %v1091, %v1179
          %v1181 = vpop.f32.mrb[0].mxu0
          %1182 = vmatprep.mubr.f32.mxu0 0.0
          %1183 = vmatmul.mubr.f32.gmra.mrb[0].mxu0 %v1059
          %v1184 = vpop.f32.mrb[0].mxu0
          %v1185 = vadd.f32 %v1091, %v1184
          %v1186 = vpop.f32.mrb[0].mxu0
          %1187 = vmatprep.mubr.f32.mxu0 0.0
          %1188 = vmatmul.mubr.f32.gmra.mrb[0].mxu0 %v1060
          %v1189 = vpop.f32.mrb[0].mxu0
          %v1190 = vadd.f32 %v1091, %v1189
          %v1191 = vpop.f32.mrb[0].mxu0
          %1192 = vmatprep.mubr.f32.mxu0 0.0
          %1193 = vmatmul.mubr.f32.gmra.mrb[0].mxu0 %v1061
          %v1194 = vpop.f32.mrb[0].mxu0
          %v1195 = vadd.f32 %v1091, %v1194
          %v1196 = vpop.f32.mrb[0].mxu0
          %1197 = vmatprep.mubr.f32.mxu0 0.0
          %1198 = vmatmul.mubr.f32.gmra.mrb[0].mxu0 %v1062
          %v1199 = vpop.f32.mrb[0].mxu0
          %v1200 = vadd.f32 %v1091, %v1199
          %v1201 = vpop.f32.mrb[0].mxu0
          %1202 = vmatprep.mubr.f32.mxu0 0.0
          %1203 = vmatmul.mubr.f32.gmra.mrb[0].mxu0 %v1063
          %v1204 = vpop.f32.mrb[0].mxu0
          %v1205 = vadd.f32 %v1091, %v1204
          %v1206 = vpop.f32.mrb[0].mxu0
          %1207 = vmatprep.mubr.f32.mxu0 0.0
          %1208 = vmatmul.mubr.f32.gmra.mrb[0].mxu0 %v1064
          %v1209 = vpop.f32.mrb[0].mxu0
          %v1210 = vadd.f32 %v1091, %v1209
          %v1211 = vpop.f32.mrb[0].mxu0
          %1212 = vmatprep.mubr.f32.mxu0 0.0
          %1213 = vmatmul.mubr.f32.gmra.mrb[0].mxu0 %v1065
          %v1214 = vpop.f32.mrb[0].mxu0
          %v1215 = vadd.f32 %v1091, %v1214
          %v1216 = vpop.f32.mrb[0].mxu0
          %1217 = vmatprep.mubr.f32.mxu0 0.0
          %1218 = vmatmul.mubr.f32.gmra.mrb[0].mxu0 %v1066
          %v1219 = vpop.f32.mrb[0].mxu0
          %v1220 = vadd.f32 %v1091, %v1219
          %v1221 = vpop.f32.mrb[0].mxu0
          %1222 = vmatprep.mubr.f32.mxu0 0.0
          %1223 = vmatmul.mubr.f32.gmra.mrb[0].mxu0 %v1067
          %v1224 = vpop.f32.mrb[0].mxu0
          %v1225 = vadd.f32 %v1091, %v1224
          %v1226 = vpop.f32.mrb[0].mxu0
          %1227 = vmatprep.mubr.f32.mxu0 0.0
          %1228 = vmatmul.mubr.f32.gmra.mrb[0].mxu0 %v1068
          %v1229 = vpop.f32.mrb[0].mxu0
          %v1230 = vadd.f32 %v1091, %v1229
          %v1231 = vpop.f32.mrb[0].mxu0
          %1232 = vmatprep.mubr.f32.mxu0 0.0
          %1233 = vmatmul.mubr.f32.gmra.mrb[0].mxu0 %v1069
          %v1234 = vpop.f32.mrb[0].mxu0
          %v1235 = vadd.f32 %v1091, %v1234
          %v1236 = vpop.f32.mrb[0].mxu0
          %1237 = vdwg.mxu0
          %1238 = vst [vmem:[%s296] sm:$0xff] %v1160
          %1239 = vst [vmem:[%s296 + $0x8] sm:$0xff] %v1165
          %1240 = vst [vmem:[%s296 + $0x10] sm:$0xff] %v1170
          %1241 = vst [vmem:[%s296 + $0x18] sm:$0xff] %v1175
          %1242 = vst [vmem:[%s296 + $0x20] sm:$0xff] %v1180
          %1243 = vst [vmem:[%s296 + $0x28] sm:$0xff] %v1185
          %1244 = vst [vmem:[%s296 + $0x30] sm:$0xff] %v1190
          %1245 = vst [vmem:[%s296 + $0x38] sm:$0xff] %v1195
          %1246 = vst [vmem:[%s296 + $0x40] sm:$0xff] %v1200
          %1247 = vst [vmem:[%s296 + $0x48] sm:$0xff] %v1205
          %1248 = vst [vmem:[%s296 + $0x50] sm:$0xff] %v1210
          %1249 = vst [vmem:[%s296 + $0x58] sm:$0xff] %v1215
          %1250 = vst [vmem:[%s296 + $0x60] sm:$0xff] %v1220
          %1251 = vst [vmem:[%s296 + $0x68] sm:$0xff] %v1225
          %1252 = vst [vmem:[%s296 + $0x70] sm:$0xff] %v1230
          %1253 = vst [vmem:[%s296 + $0x78] sm:$0xff] %v1235
        $region60: #{tpu_custom_call.1} parent=39 // pred_fallthru
          _
        %s1254 = sand.u32 %s160, 1
        %s1255 = scalar_lea.sflag [#allocation5], %s1254
        %s1256 = sand.u32 %s160, 1
        %s1257 = smul.addr %s1256, 128
        %s1258 = scalar_lea.vmem [#allocation9], %s1257
        // Predicated region
        $region61: #{tpu_custom_call.1} parent=39 // pred_check
          %p1259 = pneg %p170
        $region62: #{tpu_custom_call.1} parent=39 // pred_check_branch
          %1261 = sbr.rel (%p1259) target = $region64
        $region63: #{tpu_custom_call.1} parent=39 // pred_region
          %s1262 = smul.u32 16, %s27
          %s1264 = ssub.s32 2048, 2048
          %1265 = vsyncadd %s1255, %s1264
          %s1266 = smul.addr %s1262, 128
          %s1267 = scalar_lea.hbm %s5, %s1266
          %s1268 = sshll.u32 %s1258, 4
          %s1269 = int_to_ptr.vmem [resolvable:$true] %s1268
          %1274 = dma.vmem_to_hbm [thread:$0]  %s1269, 2048, %s1267, %s1255, 128, 128, 8
        $region64: #{tpu_custom_call.1} parent=39 // pred_fallthru
          _
      $region40: #{tpu_custom_call.1} parent=5 // pred_fallthru
        _
      %p1275 = scmp.le.s32.totalorder 2, %s18
      // Predicated region
      $region65: #{tpu_custom_call.1} parent=5 // pred_check
        %p1276 = pneg %p1275
      $region66: #{tpu_custom_call.1} parent=5 // pred_check_branch
        %1278 = sbr.rel (%p1276) target = $region68
      $region67: #{tpu_custom_call.1} parent=5 // pred_region
        %s1279 = ssub.s32 %s18, 2
        // Predicated region
        $region69: #{tpu_custom_call.1} parent=67 // pred_check
          %p1280 = pneg %p176
        $region70: #{tpu_custom_call.1} parent=67 // pred_check_branch
          %1282 = sbr.rel (%p1280) target = $region72
        $region71: #{tpu_custom_call.1} parent=67 // pred_region
          %s1283 = sand.u32 %s161, 1
          %s1284 = scalar_lea.sflag [#allocation5], %s1283
          %s1285 = sand.u32 %s161, 1
          %s1286 = smul.addr %s1285, 128
          %s1287 = scalar_lea.vmem [#allocation9], %s1286
          %1288 = dma.done %s1284, 2048
        $region72: #{tpu_custom_call.1} parent=67 // pred_fallthru
          _
      $region68: #{tpu_custom_call.1} parent=5 // pred_fallthru
        _
    $region6: #{tpu_custom_call.1} parent=1 // loop_footer
      %s22 = sadd.s32 1, %s18
    $region7: #{tpu_custom_call.1} parent=1 // loop_footer_branch
      %17 = sbr.rel target = $region3
    $region8: #{tpu_custom_call.1} parent=1 // loop_exit
      _
    %1289 = vsyncpa [#allocation4], 1
    %s1290 = scalar_lea.sflag [#allocation4], 1
    %1291 = vsyncpa %s1290, 1
    %1292 = vsyncpa [#allocation7], 1
    %1293 = vsyncpa [#allocation5], 1
    %s1294 = scalar_lea.sflag [#allocation5], 1
    %1295 = vsyncpa %s1294, 1

</llo_original>
